<compile_context>
chip_gen: v5e
topology: v5e:2x2
jax: 0.10.0
libtpu: 0.0.40
codegen_flags: <defaults>
</compile_context>

<pallas_src>
import functools
import math

import jax
import jax.numpy as jnp
from jax.experimental import pallas as pl
from jax.experimental.pallas import tpu as pltpu


# ---------------------------------------------------------------------------
# helpers
# ---------------------------------------------------------------------------
_VMEM_LIMIT = 32 * 1024 * 1024   # safe on v5e/v6e (128 MiB) and v7x (64 MiB/TC)
_MASK_VALUE = -10000.0           # matches the module's masked_bias
_MAX_SINGLE_K = 2048             # full-K matmul (no K loop) below this


def _fit_tile(dim, preferred, multiple):
    """Largest tile <= preferred that divides `dim` and is a multiple of
    `multiple`; falls back to the full dim (capped so it cannot silently blow
    past the VMEM budget)."""
    if dim <= preferred:
        return dim
    t = (preferred // multiple) * multiple
    while t >= multiple:
        if dim % t == 0:
            return t
        t -= multiple
    if dim > 4 * preferred:
        raise ValueError(
            f"no tile <= {preferred} (multiple of {multiple}) divides {dim}; "
            "pad the input to a friendlier size")
    return dim


# ---------------------------------------------------------------------------
# tiled matmul + bias  (Conv1D:  y = x @ W + b)
# ---------------------------------------------------------------------------
def _matmul_bias_kernel(x_ref, w_ref, b_ref, o_ref, *, compute_dtype):
    # Full-K variant: no K grid axis, no accumulator scratch.
    acc = jnp.dot(x_ref[...].astype(compute_dtype),
                  w_ref[...].astype(compute_dtype),
                  preferred_element_type=jnp.float32)
    o_ref[...] = (acc + b_ref[...].astype(jnp.float32)).astype(o_ref.dtype)


def _matmul_bias_kloop_kernel(x_ref, w_ref, b_ref, o_ref, acc_ref, *, n_k,
                              compute_dtype):
    k = pl.program_id(2)

    @pl.when(k == 0)
    def _init():
        acc_ref[...] = jnp.zeros_like(acc_ref)

    acc_ref[...] += jnp.dot(x_ref[...].astype(compute_dtype),
                            w_ref[...].astype(compute_dtype),
                            preferred_element_type=jnp.float32)

    @pl.when(k == n_k - 1)
    def _finalize():
        o_ref[...] = (acc_ref[...]
                      + b_ref[...].astype(jnp.float32)).astype(o_ref.dtype)


def matmul_bias(x, w, b, *, out_dtype=None, compute_dtype=jnp.bfloat16,
                tm=512, tn=512, tk=512, max_single_k=_MAX_SINGLE_K):
    """y = x @ w + b with f32 accumulation; bf16 (or f32) MXU operands."""
    M, K = x.shape
    K2, N = w.shape
    assert K == K2 and b.shape == (N,)
    if out_dtype is None:
        out_dtype = x.dtype
    tm = _fit_tile(M, tm, 8)
    tn = _fit_tile(N, tn, 128)
    b2 = b.reshape(1, N)

    if K <= max_single_k:
        kernel = functools.partial(_matmul_bias_kernel,
                                   compute_dtype=compute_dtype)
        return pl.pallas_call(
            kernel,
            out_shape=jax.ShapeDtypeStruct((M, N), out_dtype),
            grid_spec=pltpu.PrefetchScalarGridSpec(
                num_scalar_prefetch=0,
                grid=(M // tm, N // tn),
                in_specs=[
                    pl.BlockSpec((tm, K), lambda i, j: (i, 0)),
                    pl.BlockSpec((K, tn), lambda i, j: (0, j)),
                    pl.BlockSpec((1, tn), lambda i, j: (0, j)),
                ],
                out_specs=pl.BlockSpec((tm, tn), lambda i, j: (i, j)),
            ),
            compiler_params=pltpu.CompilerParams(
                dimension_semantics=("parallel", "parallel"),
                vmem_limit_bytes=_VMEM_LIMIT),
        )(x, w, b2)

    tk = _fit_tile(K, tk, 128)
    kernel = functools.partial(_matmul_bias_kloop_kernel, n_k=K // tk,
                               compute_dtype=compute_dtype)
    return pl.pallas_call(
        kernel,
        out_shape=jax.ShapeDtypeStruct((M, N), out_dtype),
        grid_spec=pltpu.PrefetchScalarGridSpec(
            num_scalar_prefetch=0,
            grid=(M // tm, N // tn, K // tk),
            in_specs=[
                pl.BlockSpec((tm, tk), lambda i, j, k: (i, k)),
                pl.BlockSpec((tk, tn), lambda i, j, k: (k, j)),
                pl.BlockSpec((1, tn), lambda i, j, k: (0, j)),
            ],
            out_specs=pl.BlockSpec((tm, tn), lambda i, j, k: (i, j)),
            scratch_shapes=[pltpu.VMEM((tm, tn), jnp.float32)],
        ),
        compiler_params=pltpu.CompilerParams(
            dimension_semantics=("parallel", "parallel", "arbitrary"),
            vmem_limit_bytes=_VMEM_LIMIT),
    )(x, w, b2)


# ---------------------------------------------------------------------------
# causal flash attention reading the packed (B*T, 3E) qkv layout directly
# (head-paired, lane-dense 128-wide blocks), writing merged-head (B*T, E) ctx
# ---------------------------------------------------------------------------
def _flash_attn_kernel(q_ref, k_ref, v_ref, o_ref, m_ref, l_ref, acc_ref,
                       *, tq, tk, n_kv, hp, head_dim, approx_recip):
    qi = pl.program_id(2)
    ki = pl.program_id(3)
    q_start = qi * tq
    kv_start = ki * tk

    @pl.when(ki == 0)
    def _init():
        m_ref[...] = jnp.full_like(m_ref, -jnp.inf)
        l_ref[...] = jnp.zeros_like(l_ref)
        acc_ref[...] = jnp.zeros_like(acc_ref)

    # Skip KV tiles that lie entirely in the causally-masked (future) region.
    @pl.when(kv_start <= q_start + tq - 1)
    def _compute():
        q = q_ref[...]                       # (tq, hp*Dh) activation dtype
        k = k_ref[...]                       # (tk, hp*Dh)
        v = v_ref[...]                       # (tk, hp*Dh)

        # Causal mask (row >= col), shared across the paired heads.
        r_minus_c = (jax.lax.broadcasted_iota(jnp.int32, (tq, tk), 0)
                     - jax.lax.broadcasted_iota(jnp.int32, (tq, tk), 1))
        visible = r_minus_c >= (kv_start - q_start)

        for j in range(hp):                  # static unrolled per-head loop
            sl = slice(j * head_dim, (j + 1) * head_dim)
            # q @ k^T with no materialized transpose: contract over head_dim.
            s = jax.lax.dot_general(
                q[:, sl], k[:, sl],
                dimension_numbers=(((1,), (1,)), ((), ())),
                preferred_element_type=jnp.float32)            # (tq, tk) f32
            s = jnp.where(visible, s, jnp.float32(_MASK_VALUE))

            m_prev = m_ref[j]                                  # (tq, 1)
            m_new = jnp.maximum(m_prev, jnp.max(s, axis=-1, keepdims=True))
            alpha = jnp.exp(m_prev - m_new)
            p = jnp.exp(s - m_new)
            # TODO(synk): on v6e/v7x a bf16 exp halves EUP work; kept f32 so the
            #             same kernel is also optimal on v5e (no bf16 EUP).
            l_ref[j] = alpha * l_ref[j] + jnp.sum(p, axis=-1, keepdims=True)
            acc_ref[j] = alpha * acc_ref[j] + jax.lax.dot_general(
                p.astype(v.dtype), v[:, sl],
                dimension_numbers=(((1,), (0,)), ((), ())),
                preferred_element_type=jnp.float32)
            m_ref[j] = m_new

    @pl.when(ki == n_kv - 1)
    def _finalize():
        for j in range(hp):
            inv_l = pl.reciprocal(l_ref[j], approx=approx_recip)
            o_ref[:, j * head_dim:(j + 1) * head_dim] = (
                acc_ref[j] * inv_l).astype(o_ref.dtype)


def flash_attention_qkv(qkv, *, batch, seq_len, n_head, head_dim,
                        block_q=256, block_k=512, out_dtype=None):
    """qkv: (B*T, 3E) packed [q|k|v] Conv1D output -> ctx: (B*T, E) merged."""
    BT, threeE = qkv.shape
    E = n_head * head_dim
    assert BT == batch * seq_len and threeE == 3 * E
    if out_dtype is None:
        out_dtype = qkv.dtype

    # Head grouping ("pairing" for Dh=64): smallest group of heads whose packed
    # width is a multiple of 128 lanes -> lane-dense loads/stores.
    hp = None
    for cand in range(1, n_head + 1):
        if n_head % cand == 0 and (cand * head_dim) % 128 == 0:
            hp = cand
            break
    if hp is None:
        # TODO(synk): pad head_dim for configs with no lane-dense head grouping.
        raise NotImplementedError(
            f"head_dim={head_dim}, n_head={n_head}: no head grouping gives a "
            "multiple-of-128 block width")
    W = hp * head_dim
    HP = n_head // hp

    tq = _fit_tile(seq_len, block_q, 8)
    tk = _fit_tile(seq_len, block_k, 8)
    if tq % 8 or tk % 8:
        raise ValueError("seq_len must allow 8-aligned q/kv tiles")
    n_q = seq_len // tq
    n_kv = seq_len // tk
    k_col0 = E // W          # first k column block in the packed qkv layout
    v_col0 = 2 * E // W      # first v column block

    def q_map(b, p, qi, ki):
        return (b * n_q + qi, p)

    def k_map(b, p, qi, ki):
        # Clamp to the last causally-needed KV block so fully-masked steps
        # reuse the previously fetched block (pipeline skips the re-copy).
        last = (qi * tq + (tq - 1)) // tk
        return (b * n_kv + jnp.minimum(ki, last), k_col0 + p)

    def v_map(b, p, qi, ki):
        last = (qi * tq + (tq - 1)) // tk
        return (b * n_kv + jnp.minimum(ki, last), v_col0 + p)

    def o_map(b, p, qi, ki):
        return (b * n_q + qi, p)

    kernel = functools.partial(
        _flash_attn_kernel, tq=tq, tk=tk, n_kv=n_kv, hp=hp,
        head_dim=head_dim,
        approx_recip=(jnp.dtype(out_dtype) != jnp.dtype(jnp.float32)))

    return pl.pallas_call(
        kernel,
        out_shape=jax.ShapeDtypeStruct((BT, E), out_dtype),
        grid_spec=pltpu.PrefetchScalarGridSpec(
            num_scalar_prefetch=0,
            grid=(batch, HP, n_q, n_kv),
            in_specs=[
                pl.BlockSpec((tq, W), q_map),
                pl.BlockSpec((tk, W), k_map),
                pl.BlockSpec((tk, W), v_map),
            ],
            out_specs=pl.BlockSpec((tq, W), o_map),
            scratch_shapes=[
                pltpu.VMEM((hp, tq, 1), jnp.float32),         # running max m
                pltpu.VMEM((hp, tq, 1), jnp.float32),         # running sum l
                pltpu.VMEM((hp, tq, head_dim), jnp.float32),  # out accumulator
            ],
        ),
        compiler_params=pltpu.CompilerParams(
            dimension_semantics=("parallel", "parallel", "parallel",
                                 "arbitrary"),
            vmem_limit_bytes=_VMEM_LIMIT),
    )(qkv, qkv, qkv)


# ---------------------------------------------------------------------------
# full Attention forward (self-attention path, eval mode)
# ---------------------------------------------------------------------------
def attention_forward(hidden_states, w_attn, b_attn, w_proj, b_proj, *,
                      n_head, scale=True, mxu_dtype=jnp.bfloat16,
                      block_q=256, block_k=512):
    B, T, E = hidden_states.shape
    assert E % n_head == 0
    Dh = E // n_head
    act_dtype = (jnp.float32
                 if jnp.dtype(mxu_dtype) == jnp.dtype(jnp.float32)
                 else jnp.bfloat16)

    # Fold 1/sqrt(Dh) into the Q columns of the QKV weight/bias (one-time,
    # amortized weight transform; removes per-q-tile scaling in the kernel).
    if scale:
        inv = 1.0 / math.sqrt(float(Dh))
        col_scale = jnp.concatenate([
            jnp.full((E,), inv, dtype=w_attn.dtype),
            jnp.ones((2 * E,), dtype=w_attn.dtype)])
        w_attn = w_attn * col_scale[None, :]
        b_attn = b_attn * col_scale

    # One-time weight cast to the MXU dtype (halves weight HBM traffic and
    # removes per-tile weight casts in the matmul kernels).
    w_attn = w_attn.astype(mxu_dtype)
    w_proj = w_proj.astype(mxu_dtype)

    # 1) QKV projection (Conv1D): (B*T, E) @ (E, 3E) + b -> packed activations.
    x2d = hidden_states.reshape(B * T, E)
    qkv = matmul_bias(x2d, w_attn, b_attn, out_dtype=act_dtype,
                      compute_dtype=mxu_dtype)

    # 2) causal flash attention straight from the packed qkv layout; output is
    #    already in merged-head (B*T, E) layout (no split/merge transposes).
    ctx = flash_attention_qkv(qkv, batch=B, seq_len=T, n_head=n_head,
                              head_dim=Dh, block_q=block_q, block_k=block_k,
                              out_dtype=act_dtype)

    # 3) output projection back to the input dtype.
    out = matmul_bias(ctx, w_proj, b_proj, out_dtype=hidden_states.dtype,
                      compute_dtype=mxu_dtype)
    return out.reshape(B, T, E)


# ---------------------------------------------------------------------------
# pure-JAX reference mirroring the PyTorch module
# ---------------------------------------------------------------------------
def attention_reference(hidden_states, w_attn, b_attn, w_proj, b_proj,
                        *, n_head, scale=True):
    B, T, E = hidden_states.shape
    Dh = E // n_head
    qkv = hidden_states @ w_attn + b_attn
    q, k, v = jnp.split(qkv, 3, axis=-1)

    def split_heads(x):
        return x.reshape(B, T, n_head, Dh).transpose(0, 2, 1, 3)  # (B,H,T,Dh)

    q, k, v = split_heads(q), split_heads(k), split_heads(v)
    w = jnp.einsum("bhqd,bhkd->bhqk", q, k)
    if scale:
        w = w / math.sqrt(float(Dh))
    causal = jnp.tril(jnp.ones((T, T), dtype=bool))
    w = jnp.where(causal[None, None], w, jnp.float32(_MASK_VALUE))
    w = jax.nn.softmax(w, axis=-1)
    a = jnp.einsum("bhqk,bhkd->bhqd", w, v)
    a = a.transpose(0, 2, 1, 3).reshape(B, T, E)
    return a @ w_proj + b_proj


if __name__ == "__main__":
    # Small config consistent with the module: head_dim = 64 (as in GPT-2), so
    # the head-paired 128-lane path is exercised; T=128 with small blocks in
    # the f32 check exercises multi-tile online softmax + causal tile skipping.
    B, T, E, H = 2, 128, 256, 4

    key = jax.random.PRNGKey(0)
    k_h, k_wa, k_wp, k_ba, k_bp = jax.random.split(key, 5)

    hidden = jax.random.normal(k_h, (B, T, E), dtype=jnp.float32)
    w_attn = 0.02 * jax.random.normal(k_wa, (E, 3 * E), dtype=jnp.float32)
    b_attn = 0.02 * jax.random.normal(k_ba, (3 * E,), dtype=jnp.float32)
    w_proj = 0.02 * jax.random.normal(k_wp, (E, E), dtype=jnp.float32)
    b_proj = 0.02 * jax.random.normal(k_bp, (E,), dtype=jnp.float32)

    ref = attention_reference(hidden, w_attn, b_attn, w_proj, b_proj,
                              n_head=H, scale=True)

    # Exercise the K-loop matmul variant (not hit by the attention shapes).
    xk = jax.random.normal(jax.random.PRNGKey(1), (128, 512), dtype=jnp.float32)
    wk = 0.02 * jax.random.normal(jax.random.PRNGKey(2), (512, 256),
                                  dtype=jnp.float32)
    bk = 0.02 * jnp.ones((256,), jnp.float32)
    yk = matmul_bias(xk, wk, bk, out_dtype=jnp.float32,
                     compute_dtype=jnp.float32, tk=128, max_single_k=0)
    yk = jax.block_until_ready(yk)
    assert jnp.allclose(yk, xk @ wk + bk, atol=1e-3, rtol=1e-3), \
        "K-loop matmul mismatch"

    # f32 MXU + f32 activations: tight check; small blocks exercise the
    # online-softmax accumulation, causal tile skip and clamped kv index_map.
    out_f32 = attention_forward(hidden, w_attn, b_attn, w_proj, b_proj,
                                n_head=H, scale=True, mxu_dtype=jnp.float32,
                                block_q=64, block_k=32)
    out_f32 = jax.block_until_ready(out_f32)
    assert out_f32.shape == (B, T, E)
    assert jnp.allclose(out_f32, ref, atol=2e-3, rtol=2e-2), \
        "f32 path mismatch vs reference"

    # Default bf16 path (bf16 MXU operands + bf16 inter-kernel activations,
    # f32 accumulation): loose check vs. the f32 reference.
    out_bf16 = attention_forward(hidden, w_attn, b_attn, w_proj, b_proj,
                                 n_head=H, scale=True)
    out_bf16 = jax.block_until_ready(out_bf16)
    assert out_bf16.shape == (B, T, E)
    assert jnp.allclose(out_bf16.astype(jnp.float32), ref,
                        atol=3e-2, rtol=5e-2), "bf16 path mismatch vs reference"

    print("KERNEL_OK")
</pallas_src>

<mosaic_0001>
module attributes {stable_mosaic.version = 11 : i64} {
  func.func @_matmul_bias_kloop_kernel(%arg0: i32, %arg1: i32, %arg2: i32, %arg3: memref<128x128xf32, #tpu.memory_space<vmem>>, %arg4: memref<128x256xf32, #tpu.memory_space<vmem>>, %arg5: memref<1x256xf32, #tpu.memory_space<vmem>>, %arg6: memref<128x256xf32, #tpu.memory_space<vmem>>, %arg7: memref<128x256xf32, #tpu.memory_space<vmem>>) attributes {dimension_semantics = [#tpu.dimension_semantics<parallel>, #tpu.dimension_semantics<parallel>, #tpu.dimension_semantics<arbitrary>], iteration_bounds = array<i64: 1, 1, 4>, scalar_prefetch = 0 : i64, scratch_operands = 1 : i64, tpu.core_type = #tpu.core_type<tc>, window_params = [{transform_indices = @transform_0, window_bounds = array<i64: 128, 128>}, {transform_indices = @transform_1, window_bounds = array<i64: 128, 256>}, {transform_indices = @transform_2, window_bounds = array<i64: 1, 256>}, {transform_indices = @transform_3, window_bounds = array<i64: 128, 256>}]} {
    %c0_i32 = arith.constant 0 : i32
    %0 = arith.cmpi eq, %arg2, %c0_i32 : i32
    %1 = arith.extui %0 : i1 to i32
    %c0_i32_0 = arith.constant 0 : i32
    %2 = arith.cmpi ne, %1, %c0_i32_0 : i32
    scf.if %2 {
      %cst_9 = arith.constant 0.000000e+00 : f32
      %12 = vector.broadcast %cst_9 : f32 to vector<128x256xf32>
      %c0_10 = arith.constant 0 : index
      %c0_11 = arith.constant 0 : index
      %13 = vector.load %arg7[%c0_10, %c0_11] : memref<128x256xf32, #tpu.memory_space<vmem>>, vector<128x256xf32>
      tpu.vector_store %arg7[%c0_10, %c0_11], %12 {strides = array<i32>} : memref<128x256xf32, #tpu.memory_space<vmem>>, vector<128x256xf32>,
    } else {
    }
    %c0 = arith.constant 0 : index
    %c0_1 = arith.constant 0 : index
    %3 = vector.load %arg7[%c0, %c0_1] : memref<128x256xf32, #tpu.memory_space<vmem>>, vector<128x256xf32>
    %c0_2 = arith.constant 0 : index
    %c0_3 = arith.constant 0 : index
    %4 = vector.load %arg3[%c0_2, %c0_3] : memref<128x128xf32, #tpu.memory_space<vmem>>, vector<128x128xf32>
    %c0_4 = arith.constant 0 : index
    %c0_5 = arith.constant 0 : index
    %5 = vector.load %arg4[%c0_4, %c0_5] : memref<128x256xf32, #tpu.memory_space<vmem>>, vector<128x256xf32>
    %cst = arith.constant dense<0.000000e+00> : vector<128x256xf32>
    %6 = tpu.matmul %4, %5, %cst {dimension_numbers = #tpu.dot_dimension_numbers<[1], [0], [0], [1], [0, 0, 1, 1], [], []>} : vector<128x128xf32>, vector<128x256xf32>, vector<128x256xf32> -> vector<128x256xf32>
    %7 = arith.addf %3, %6 : vector<128x256xf32>
    %c0_6 = arith.constant 0 : index
    %c0_7 = arith.constant 0 : index
    %8 = vector.load %arg7[%c0_6, %c0_7] : memref<128x256xf32, #tpu.memory_space<vmem>>, vector<128x256xf32>
    tpu.vector_store %arg7[%c0_6, %c0_7], %7 {strides = array<i32>} : memref<128x256xf32, #tpu.memory_space<vmem>>, vector<128x256xf32>,
    %c3_i32 = arith.constant 3 : i32
    %9 = arith.cmpi eq, %arg2, %c3_i32 : i32
    %10 = arith.extui %9 : i1 to i32
    %c0_i32_8 = arith.constant 0 : i32
    %11 = arith.cmpi ne, %10, %c0_i32_8 : i32
    scf.if %11 {
      %c0_9 = arith.constant 0 : index
      %c0_10 = arith.constant 0 : index
      %12 = vector.load %arg7[%c0_9, %c0_10] : memref<128x256xf32, #tpu.memory_space<vmem>>, vector<128x256xf32>
      %c0_11 = arith.constant 0 : index
      %c0_12 = arith.constant 0 : index
      %13 = vector.load %arg5[%c0_11, %c0_12] : memref<1x256xf32, #tpu.memory_space<vmem>>, vector<1x256xf32>
      %14 = vector.broadcast %13 : vector<1x256xf32> to vector<128x256xf32>
      %15 = arith.addf %12, %14 : vector<128x256xf32>
      %c0_13 = arith.constant 0 : index
      %c0_14 = arith.constant 0 : index
      %16 = vector.load %arg6[%c0_13, %c0_14] : memref<128x256xf32, #tpu.memory_space<vmem>>, vector<128x256xf32>
      tpu.vector_store %arg6[%c0_13, %c0_14], %15 {strides = array<i32>} : memref<128x256xf32, #tpu.memory_space<vmem>>, vector<128x256xf32>,
    } else {
    }
    return
  }
  func.func @transform_0(%arg0: i32, %arg1: i32, %arg2: i32) -> (i32, i32) {
    %c0_i32 = arith.constant 0 : i32
    return %arg0, %arg2 : i32, i32
  }
  func.func @transform_1(%arg0: i32, %arg1: i32, %arg2: i32) -> (i32, i32) {
    %c0_i32 = arith.constant 0 : i32
    return %arg2, %arg1 : i32, i32
  }
  func.func @transform_2(%arg0: i32, %arg1: i32, %arg2: i32) -> (i32, i32) {
    %c0_i32 = arith.constant 0 : i32
    %c0_i32_0 = arith.constant 0 : i32
    return %c0_i32, %arg1 : i32, i32
  }
  func.func @transform_3(%arg0: i32, %arg1: i32, %arg2: i32) -> (i32, i32) {
    %c0_i32 = arith.constant 0 : i32
    return %arg0, %arg1 : i32, i32
  }
}

</mosaic_0001>

<llo_original>
// kernel: tpu_custom_call.1
$region0: #{tpu_custom_call.1}
  #allocation0 [shape = 'u32[]', space=smem, size = 0x4, offset = 0x4, fixed_abs, tag = 'smem constant byte address 0x4 - core index']
  #allocation1 [shape = 'u32[72,128]{1,0:T(1,128)}', space=vmem, size = 0x9000, scoped, tag = 'internal scratch']
  #allocation2 [shape = 'f32[128,256]{1,0:T(8,128)}', space=vmem, size = 0x20000, scoped, tag = 'scratch operand']
  %s0 = inlined_call_operand.hbm [shape: f32[128,512], index: 0, kind: input, shape index: {}]
  %s1 = inlined_call_operand.hbm [shape: f32[512,256], index: 1, kind: input, shape index: {}]
  %s2 = inlined_call_operand.hbm [shape: f32[1,256], index: 2, kind: input, shape index: {}]
  %s3 = inlined_call_operand.hbm [shape: f32[128,256], index: 3, kind: output, shape index: {}]
  %s4 = sld [smem:[#allocation0]]
  $region65: #{tpu_custom_call.1} parent=0
    _
  %s6 = ssub.s32 1, %s4
  %s7 = scalar_select 0, %s6, %s4
  $region1: #{tpu_custom_call.1} parent=0
    #allocation3 [shape = 'u8[131072]{0}', space=vmem, size = 0x20000, scoped, tag = 'input window, operand 0']
    #allocation4 [shape = 's32[2]{0}', space=sflag, size = 0x8, scoped, tag = 'scoped memory for tpu_custom_call.1']
    #allocation5 [shape = 's32[2]{0}', space=sflag, size = 0x8, scoped, tag = 'scoped memory for tpu_custom_call.1']
    #allocation6 [shape = 'u8[262144]{0}', space=vmem, size = 0x40000, scoped, tag = 'input window, operand 1']
    #allocation7 [shape = 's32[2]{0}', space=sflag, size = 0x8, scoped, tag = 'scoped memory for tpu_custom_call.1']
    #allocation8 [shape = 'u8[1024]{0}', space=vmem, size = 0x400, scoped, tag = 'input window, operand 2, single buffered']
    #allocation9 [shape = 'u8[131072]{0}', space=vmem, size = 0x20000, scoped, tag = 'output window, operand 0, single buffered']
    %8 = vsyncpa [#allocation4], 0
    %s9 = scalar_lea.sflag [#allocation4], 1
    %10 = vsyncpa %s9, 0
    %11 = vsyncpa [#allocation7], 0
    %s12 = scalar_lea.sflag [#allocation7], 1
    %13 = vsyncpa %s12, 0
    %14 = vsyncpa [#allocation5], 0
    loop: start=0, step=1, limit=6
    $region2: #{tpu_custom_call.1} parent=1 // loop_pre_header
      _
    $region3: #{tpu_custom_call.1} parent=1 // loop_header
      %s16 = sphi 0, %s20
      %p17 = scmp.ge.s32.totalorder %s16, 6
      %s23 = sphi 0, %s42
      %s24 = sphi 0, %s38
      %s25 = sphi 0, %s34
      %s26 = sphi 0, %s23
      %s27 = sphi 0, %s24
      %s28 = sphi 0, %s25
      %s29 = sphi 0, %s26
      %s30 = sphi 0, %s27
      %s31 = sphi 0, %s28
      %s47 = sphi 0, %s49
      %s50 = sphi 0, %s47
      %s51 = sphi 0, %s50
      %s67 = sphi 0, %s51
      %s75 = sphi 0, %s77
      %s78 = sphi 0, %s75
      %s79 = sphi 0, %s78
      %s95 = sphi 0, %s79
      %s101 = sphi 0, %s103
      %s104 = sphi 0, %s101
      %s105 = sphi 0, %s104
      %s121 = sphi 0, %s105
      %s129 = sphi 0, %s131
      %s132 = sphi 0, %s129
      %s133 = sphi 0, %s132
      %s149 = sphi 0, %s133
    $region4: #{tpu_custom_call.1} parent=1 // loop_header_branch
      %19 = sbr.rel (%p17) target = $region8
    $region5: #{tpu_custom_call.1} parent=1 // loop_body
      %s21 = ssub.s32 %s16, 1
      %s22 = ssub.s32 %s16, 2
      %s32 = sadd.s32 1, %s25
      %p33 = scmp.ge.s32.totalorder %s32, 4
      %s34 = scalar_select %p33, 0, %s32
      %s35 = sadd.s32 1, %s24
      %s36 = scalar_select %p33, %s35, %s24
      %p37 = scmp.ge.s32.totalorder %s36, 1
      %s38 = scalar_select %p37, 0, %s36
      %s39 = sadd.s32 1, %s23
      %s40 = scalar_select %p37, %s39, %s23
      %p41 = scmp.ge.s32.totalorder %s40, 1
      %s42 = scalar_select %p41, 0, %s40
      %s43 = ssub.s32 %s23, %s42
      %s44 = ssub.s32 %s25, %s34
      %s45 = sor.u32 %s43, %s44
      %p46 = scmp.eq.s32.totalorder %s45, 0
      %s48 = sadd.s32 %s47, 1
      %s49 = scalar_select %p46, %s47, %s48
      %p52 = pneg %p46
      %p53 = scmp.eq.s32.totalorder %s16, 3
      %p54 = por %p52, %p53
      %p55 = scmp.ne.s32.totalorder %s47, %s50
      %p56 = scmp.eq.s32.totalorder %s16, 0
      %p57 = por %p55, %p56
      %p58 = scmp.ne.s32.totalorder %s47, %s50
      %p59 = scmp.eq.s32.totalorder %s21, 3
      %p60 = por %p58, %p59
      %p61 = scmp.ne.s32.totalorder %s50, %s51
      %p62 = scmp.eq.s32.totalorder %s21, 0
      %p63 = por %p61, %p62
      %p64 = scmp.ne.s32.totalorder %s50, %s51
      %p65 = scmp.eq.s32.totalorder %s22, 3
      %p66 = por %p64, %p65
      %p68 = scmp.ne.s32.totalorder %s51, %s67
      %p69 = scmp.eq.s32.totalorder %s22, 0
      %p70 = por %p68, %p69
      %s71 = ssub.s32 %s25, %s34
      %s72 = ssub.s32 %s24, %s38
      %s73 = sor.u32 %s71, %s72
      %p74 = scmp.eq.s32.totalorder %s73, 0
      %s76 = sadd.s32 %s75, 1
      %s77 = scalar_select %p74, %s75, %s76
      %p80 = pneg %p74
      %p81 = scmp.eq.s32.totalorder %s16, 3
      %p82 = por %p80, %p81
      %p83 = scmp.ne.s32.totalorder %s75, %s78
      %p84 = scmp.eq.s32.totalorder %s16, 0
      %p85 = por %p83, %p84
      %p86 = scmp.ne.s32.totalorder %s75, %s78
      %p87 = scmp.eq.s32.totalorder %s21, 3
      %p88 = por %p86, %p87
      %p89 = scmp.ne.s32.totalorder %s78, %s79
      %p90 = scmp.eq.s32.totalorder %s21, 0
      %p91 = por %p89, %p90
      %p92 = scmp.ne.s32.totalorder %s78, %s79
      %p93 = scmp.eq.s32.totalorder %s22, 3
      %p94 = por %p92, %p93
      %p96 = scmp.ne.s32.totalorder %s79, %s95
      %p97 = scmp.eq.s32.totalorder %s22, 0
      %p98 = por %p96, %p97
      %s99 = ssub.s32 %s24, %s38
      %p100 = scmp.eq.s32.totalorder %s99, 0
      %s102 = sadd.s32 %s101, 1
      %s103 = scalar_select %p100, %s101, %s102
      %p106 = pneg %p100
      %p107 = scmp.eq.s32.totalorder %s16, 3
      %p108 = por %p106, %p107
      %p109 = scmp.ne.s32.totalorder %s101, %s104
      %p110 = scmp.eq.s32.totalorder %s16, 0
      %p111 = por %p109, %p110
      %p112 = scmp.ne.s32.totalorder %s101, %s104
      %p113 = scmp.eq.s32.totalorder %s21, 3
      %p114 = por %p112, %p113
      %p115 = scmp.ne.s32.totalorder %s104, %s105
      %p116 = scmp.eq.s32.totalorder %s21, 0
      %p117 = por %p115, %p116
      %p118 = scmp.ne.s32.totalorder %s104, %s105
      %p119 = scmp.eq.s32.totalorder %s22, 3
      %p120 = por %p118, %p119
      %p122 = scmp.ne.s32.totalorder %s105, %s121
      %p123 = scmp.eq.s32.totalorder %s22, 0
      %p124 = por %p122, %p123
      %s125 = ssub.s32 %s23, %s42
      %s126 = ssub.s32 %s24, %s38
      %s127 = sor.u32 %s125, %s126
      %p128 = scmp.eq.s32.totalorder %s127, 0
      %s130 = sadd.s32 %s129, 1
      %s131 = scalar_select %p128, %s129, %s130
      %p134 = pneg %p128
      %p135 = scmp.eq.s32.totalorder %s16, 3
      %p136 = por %p134, %p135
      %p137 = scmp.ne.s32.totalorder %s129, %s132
      %p138 = scmp.eq.s32.totalorder %s16, 0
      %p139 = por %p137, %p138
      %p140 = scmp.ne.s32.totalorder %s129, %s132
      %p141 = scmp.eq.s32.totalorder %s21, 3
      %p142 = por %p140, %p141
      %p143 = scmp.ne.s32.totalorder %s132, %s133
      %p144 = scmp.eq.s32.totalorder %s21, 0
      %p145 = por %p143, %p144
      %p146 = scmp.ne.s32.totalorder %s132, %s133
      %p147 = scmp.eq.s32.totalorder %s22, 3
      %p148 = por %p146, %p147
      %p150 = scmp.ne.s32.totalorder %s133, %s149
      %p151 = scmp.eq.s32.totalorder %s22, 0
      %p152 = por %p150, %p151
      %p153 = scmp.le.s32.totalorder 1, %s16
      %p154 = scmp.lt.s32.totalorder %s16, 5
      %p155 = pnand %p153, %p154
      %p156 = pneg %p155
      // Predicated region
      $region9: #{tpu_custom_call.1} parent=5 // pred_check
        _
      $region10: #{tpu_custom_call.1} parent=5 // pred_check_branch
        %158 = sbr.rel (%p155) target = $region12
      $region11: #{tpu_custom_call.1} parent=5 // pred_region
        %s159 = ssub.s32 %s16, 1
        // Predicated region
        $region13: #{tpu_custom_call.1} parent=11 // pred_check
          %p160 = pneg %p117
        $region14: #{tpu_custom_call.1} parent=11 // pred_check_branch
          %162 = sbr.rel (%p160) target = $region16
        $region15: #{tpu_custom_call.1} parent=11 // pred_region
          %s163 = smul.u32 2, %s27
          %165 = vsyncadd [#allocation7], 0
          %s166 = scalar_lea.hbm %s2, %s163
          %s168 = sshll.u32 %s166, 4
          %s169 = int_to_ptr.hbm [resolvable:$true] %s168
          %s170 = sshll.u32 [#allocation8], 4
          %s171 = int_to_ptr.vmem [resolvable:$true] %s170
          %173 = dma.hbm_to_vmem [thread:$0]  %s169, 32, %s171, [#allocation7]
        $region16: #{tpu_custom_call.1} parent=11 // pred_fallthru
          _
      $region12: #{tpu_custom_call.1} parent=5 // pred_fallthru
        _
      %p174 = scmp.lt.s32.totalorder %s16, 4
      // Predicated region
      $region17: #{tpu_custom_call.1} parent=5 // pred_check
        %p175 = pneg %p174
      $region18: #{tpu_custom_call.1} parent=5 // pred_check_branch
        %177 = sbr.rel (%p175) target = $region20
      $region19: #{tpu_custom_call.1} parent=5 // pred_region
        // Predicated region
        $region21: #{tpu_custom_call.1} parent=19 // pred_check
          %p178 = pneg %p57
        $region22: #{tpu_custom_call.1} parent=19 // pred_check_branch
          %180 = sbr.rel (%p178) target = $region24
        $region23: #{tpu_custom_call.1} parent=19 // pred_region
          %s181 = sand.u32 %s47, 1
          %s182 = scalar_lea.sflag [#allocation4], %s181
          %s183 = sand.u32 %s47, 1
          %s184 = smul.addr %s183, 128
          %s185 = scalar_lea.vmem [#allocation3], %s184
          %s186 = smul.u32 16, %s23
          %188 = vsyncadd %s182, 0
          %s189 = smul.addr %s186, 4
          %s190 = sadd.s32 %s25, %s189
          %s191 = smul.addr %s190, 8
          %s192 = scalar_lea.hbm %s0, %s191
          %s193 = sshll.u32 %s192, 4
          %s194 = int_to_ptr.hbm [resolvable:$true] %s193
          %s195 = sshll.u32 %s185, 4
          %s196 = int_to_ptr.vmem [resolvable:$true] %s195
          %201 = dma.hbm_to_vmem [thread:$0]  %s194, 2048, %s196, %s182, 512, 128, 8
        $region24: #{tpu_custom_call.1} parent=19 // pred_fallthru
          _
        // Predicated region
        $region25: #{tpu_custom_call.1} parent=19 // pred_check
          %p202 = pneg %p85
        $region26: #{tpu_custom_call.1} parent=19 // pred_check_branch
          %204 = sbr.rel (%p202) target = $region28
        $region27: #{tpu_custom_call.1} parent=19 // pred_region
          %s205 = sand.u32 %s16, 1
          %s206 = scalar_lea.sflag [#allocation7], %s205
          %s207 = sand.u32 %s75, 1
          %s208 = smul.addr %s207, 256
          %s209 = scalar_lea.vmem [#allocation6], %s208
          %s210 = smul.u32 16, %s25
          %s211 = smul.u32 2, %s24
          %213 = vsyncadd %s206, 0
          %s214 = smul.addr %s210, 2
          %s215 = sadd.s32 %s211, %s214
          %s216 = smul.addr %s215, 8
          %s217 = scalar_lea.hbm %s1, %s216
          %s218 = sshll.u32 %s217, 4
          %s219 = int_to_ptr.hbm [resolvable:$true] %s218
          %s220 = sshll.u32 %s209, 4
          %s221 = int_to_ptr.vmem [resolvable:$true] %s220
          %226 = dma.hbm_to_vmem [thread:$0]  %s219, 4096, %s221, %s206, 256, 256, 16
        $region28: #{tpu_custom_call.1} parent=19 // pred_fallthru
          _
      $region20: #{tpu_custom_call.1} parent=5 // pred_fallthru
        _
      %p227 = scmp.le.s32.totalorder 1, %s16
      %p228 = scmp.lt.s32.totalorder %s16, 5
      %p229 = pnand %p227, %p228
      %p230 = pneg %p229
      // Predicated region
      $region29: #{tpu_custom_call.1} parent=5 // pred_check
        _
      $region30: #{tpu_custom_call.1} parent=5 // pred_check_branch
        %232 = sbr.rel (%p229) target = $region32
      $region31: #{tpu_custom_call.1} parent=5 // pred_region
        %s233 = ssub.s32 %s16, 1
        %s234 = sand.u32 %s50, 1
        %s235 = scalar_lea.sflag [#allocation4], %s234
        %s236 = sand.u32 %s50, 1
        %s237 = smul.addr %s236, 128
        %s238 = scalar_lea.vmem [#allocation3], %s237
        // Predicated region
        $region33: #{tpu_custom_call.1} parent=31 // pred_check
          %p239 = pneg %p63
        $region34: #{tpu_custom_call.1} parent=31 // pred_check_branch
          %241 = sbr.rel (%p239) target = $region36
        $region35: #{tpu_custom_call.1} parent=31 // pred_region
          %243 = dma.done %s235, 2048
        $region36: #{tpu_custom_call.1} parent=31 // pred_fallthru
          _
        %s244 = sand.u32 %s21, 1
        %s245 = scalar_lea.sflag [#allocation7], %s244
        %s246 = sand.u32 %s78, 1
        %s247 = smul.addr %s246, 256
        %s248 = scalar_lea.vmem [#allocation6], %s247
        // Predicated region
        $region37: #{tpu_custom_call.1} parent=31 // pred_check
          %p249 = pneg %p91
        $region38: #{tpu_custom_call.1} parent=31 // pred_check_branch
          %251 = sbr.rel (%p249) target = $region40
        $region39: #{tpu_custom_call.1} parent=31 // pred_region
          %253 = dma.done %s245, 4096
        $region40: #{tpu_custom_call.1} parent=31 // pred_fallthru
          _
        // Predicated region
        $region41: #{tpu_custom_call.1} parent=31 // pred_check
          %p254 = pneg %p117
        $region42: #{tpu_custom_call.1} parent=31 // pred_check_branch
          %256 = sbr.rel (%p254) target = $region44
        $region43: #{tpu_custom_call.1} parent=31 // pred_region
          %258 = dma.done [#allocation7], 32
        $region44: #{tpu_custom_call.1} parent=31 // pred_fallthru
          _
        %s259 = sand.u32 %s50, 1
        %s260 = scalar_lea.sflag [#allocation4], %s259
        %s261 = sand.u32 %s50, 1
        %s262 = smul.addr %s261, 128
        %s263 = scalar_lea.vmem [#allocation3], %s262
        %p264 = pneg %p63
        %p265 = pneg %p60
        %s266 = sand.u32 %s21, 1
        %s267 = scalar_lea.sflag [#allocation7], %s266
        %s268 = sand.u32 %s78, 1
        %s269 = smul.addr %s268, 256
        %s270 = scalar_lea.vmem [#allocation6], %s269
        %p271 = pneg %p91
        %p272 = pneg %p88
        %p273 = pneg %p117
        %p274 = pneg %p114
        %p275 = pneg %p145
        %p276 = pneg %p142
        %s277 = smul.u32 16, %s26
        %s278 = smul.u32 16, %s28
        %s279 = smul.u32 2, %s27
        %s280 = smul.u32 2, %s27
        %s281 = smul.u32 16, %s26
        %s282 = smul.u32 2, %s27
        %p283 = scmp.eq.s32.totalorder %s28, 0
        // Predicated region
        $region45: #{tpu_custom_call.1} parent=31 // pred_check
          %p284 = pneg %p283
        $region46: #{tpu_custom_call.1} parent=31 // pred_check_branch
          %286 = sbr.rel (%p284) target = $region48
        $region47: #{tpu_custom_call.1} parent=31 // pred_region
          %287 = vst [vmem:[#allocation2] sm:$0xff] 0.0
          %288 = vst [vmem:[#allocation2 + $0x8] sm:$0xff] 0.0
          %289 = vst [vmem:[#allocation2 + $0x10] sm:$0xff] 0.0
          %290 = vst [vmem:[#allocation2 + $0x18] sm:$0xff] 0.0
          %291 = vst [vmem:[#allocation2 + $0x20] sm:$0xff] 0.0
          %292 = vst [vmem:[#allocation2 + $0x28] sm:$0xff] 0.0
          %293 = vst [vmem:[#allocation2 + $0x30] sm:$0xff] 0.0
          %294 = vst [vmem:[#allocation2 + $0x38] sm:$0xff] 0.0
          %295 = vst [vmem:[#allocation2 + $0x40] sm:$0xff] 0.0
          %296 = vst [vmem:[#allocation2 + $0x48] sm:$0xff] 0.0
          %297 = vst [vmem:[#allocation2 + $0x50] sm:$0xff] 0.0
          %298 = vst [vmem:[#allocation2 + $0x58] sm:$0xff] 0.0
          %299 = vst [vmem:[#allocation2 + $0x60] sm:$0xff] 0.0
          %300 = vst [vmem:[#allocation2 + $0x68] sm:$0xff] 0.0
          %301 = vst [vmem:[#allocation2 + $0x70] sm:$0xff] 0.0
          %302 = vst [vmem:[#allocation2 + $0x78] sm:$0xff] 0.0
          %303 = vst [vmem:[#allocation2 + $0x80] sm:$0xff] 0.0
          %304 = vst [vmem:[#allocation2 + $0x88] sm:$0xff] 0.0
          %305 = vst [vmem:[#allocation2 + $0x90] sm:$0xff] 0.0
          %306 = vst [vmem:[#allocation2 + $0x98] sm:$0xff] 0.0
          %307 = vst [vmem:[#allocation2 + $0xa0] sm:$0xff] 0.0
          %308 = vst [vmem:[#allocation2 + $0xa8] sm:$0xff] 0.0
          %309 = vst [vmem:[#allocation2 + $0xb0] sm:$0xff] 0.0
          %310 = vst [vmem:[#allocation2 + $0xb8] sm:$0xff] 0.0
          %311 = vst [vmem:[#allocation2 + $0xc0] sm:$0xff] 0.0
          %312 = vst [vmem:[#allocation2 + $0xc8] sm:$0xff] 0.0
          %313 = vst [vmem:[#allocation2 + $0xd0] sm:$0xff] 0.0
          %314 = vst [vmem:[#allocation2 + $0xd8] sm:$0xff] 0.0
          %315 = vst [vmem:[#allocation2 + $0xe0] sm:$0xff] 0.0
          %316 = vst [vmem:[#allocation2 + $0xe8] sm:$0xff] 0.0
          %317 = vst [vmem:[#allocation2 + $0xf0] sm:$0xff] 0.0
          %318 = vst [vmem:[#allocation2 + $0xf8] sm:$0xff] 0.0
        $region48: #{tpu_custom_call.1} parent=31 // pred_fallthru
          _
        %v319 = vld [vmem:[#allocation2] sm:$0xff]
        %v320 = vld [vmem:[#allocation2 + $0x8] sm:$0xff]
        %v321 = vld [vmem:[#allocation2 + $0x10] sm:$0xff]
        %v322 = vld [vmem:[#allocation2 + $0x18] sm:$0xff]
        %v323 = vld [vmem:[#allocation2 + $0x20] sm:$0xff]
        %v324 = vld [vmem:[#allocation2 + $0x28] sm:$0xff]
        %v325 = vld [vmem:[#allocation2 + $0x30] sm:$0xff]
        %v326 = vld [vmem:[#allocation2 + $0x38] sm:$0xff]
        %v327 = vld [vmem:[#allocation2 + $0x40] sm:$0xff]
        %v328 = vld [vmem:[#allocation2 + $0x48] sm:$0xff]
        %v329 = vld [vmem:[#allocation2 + $0x50] sm:$0xff]
        %v330 = vld [vmem:[#allocation2 + $0x58] sm:$0xff]
        %v331 = vld [vmem:[#allocation2 + $0x60] sm:$0xff]
        %v332 = vld [vmem:[#allocation2 + $0x68] sm:$0xff]
        %v333 = vld [vmem:[#allocation2 + $0x70] sm:$0xff]
        %v334 = vld [vmem:[#allocation2 + $0x78] sm:$0xff]
        %v335 = vld [vmem:[#allocation2 + $0x80] sm:$0xff]
        %v336 = vld [vmem:[#allocation2 + $0x88] sm:$0xff]
        %v337 = vld [vmem:[#allocation2 + $0x90] sm:$0xff]
        %v338 = vld [vmem:[#allocation2 + $0x98] sm:$0xff]
        %v339 = vld [vmem:[#allocation2 + $0xa0] sm:$0xff]
        %v340 = vld [vmem:[#allocation2 + $0xa8] sm:$0xff]
        %v341 = vld [vmem:[#allocation2 + $0xb0] sm:$0xff]
        %v342 = vld [vmem:[#allocation2 + $0xb8] sm:$0xff]
        %v343 = vld [vmem:[#allocation2 + $0xc0] sm:$0xff]
        %v344 = vld [vmem:[#allocation2 + $0xc8] sm:$0xff]
        %v345 = vld [vmem:[#allocation2 + $0xd0] sm:$0xff]
        %v346 = vld [vmem:[#allocation2 + $0xd8] sm:$0xff]
        %v347 = vld [vmem:[#allocation2 + $0xe0] sm:$0xff]
        %v348 = vld [vmem:[#allocation2 + $0xe8] sm:$0xff]
        %v349 = vld [vmem:[#allocation2 + $0xf0] sm:$0xff]
        %v350 = vld [vmem:[#allocation2 + $0xf8] sm:$0xff]
        %v351 = vld [vmem:[%s238] sm:$0xff]
        %v352 = vld [vmem:[%s238 + $0x8] sm:$0xff]
        %v353 = vld [vmem:[%s238 + $0x10] sm:$0xff]
        %v354 = vld [vmem:[%s238 + $0x18] sm:$0xff]
        %v355 = vld [vmem:[%s238 + $0x20] sm:$0xff]
        %v356 = vld [vmem:[%s238 + $0x28] sm:$0xff]
        %v357 = vld [vmem:[%s238 + $0x30] sm:$0xff]
        %v358 = vld [vmem:[%s238 + $0x38] sm:$0xff]
        %v359 = vld [vmem:[%s238 + $0x40] sm:$0xff]
        %v360 = vld [vmem:[%s238 + $0x48] sm:$0xff]
        %v361 = vld [vmem:[%s238 + $0x50] sm:$0xff]
        %v362 = vld [vmem:[%s238 + $0x58] sm:$0xff]
        %v363 = vld [vmem:[%s238 + $0x60] sm:$0xff]
        %v364 = vld [vmem:[%s238 + $0x68] sm:$0xff]
        %v365 = vld [vmem:[%s238 + $0x70] sm:$0xff]
        %v366 = vld [vmem:[%s238 + $0x78] sm:$0xff]
        %v367 = vld [vmem:[%s248] sm:$0xff]
        %v368 = vld [vmem:[%s248 + $0x8] sm:$0xff]
        %v369 = vld [vmem:[%s248 + $0x10] sm:$0xff]
        %v370 = vld [vmem:[%s248 + $0x18] sm:$0xff]
        %v371 = vld [vmem:[%s248 + $0x20] sm:$0xff]
        %v372 = vld [vmem:[%s248 + $0x28] sm:$0xff]
        %v373 = vld [vmem:[%s248 + $0x30] sm:$0xff]
        %v374 = vld [vmem:[%s248 + $0x38] sm:$0xff]
        %v375 = vld [vmem:[%s248 + $0x40] sm:$0xff]
        %v376 = vld [vmem:[%s248 + $0x48] sm:$0xff]
        %v377 = vld [vmem:[%s248 + $0x50] sm:$0xff]
        %v378 = vld [vmem:[%s248 + $0x58] sm:$0xff]
        %v379 = vld [vmem:[%s248 + $0x60] sm:$0xff]
        %v380 = vld [vmem:[%s248 + $0x68] sm:$0xff]
        %v381 = vld [vmem:[%s248 + $0x70] sm:$0xff]
        %v382 = vld [vmem:[%s248 + $0x78] sm:$0xff]
        %v383 = vld [vmem:[%s248 + $0x80] sm:$0xff]
        %v384 = vld [vmem:[%s248 + $0x88] sm:$0xff]
        %v385 = vld [vmem:[%s248 + $0x90] sm:$0xff]
        %v386 = vld [vmem:[%s248 + $0x98] sm:$0xff]
        %v387 = vld [vmem:[%s248 + $0xa0] sm:$0xff]
        %v388 = vld [vmem:[%s248 + $0xa8] sm:$0xff]
        %v389 = vld [vmem:[%s248 + $0xb0] sm:$0xff]
        %v390 = vld [vmem:[%s248 + $0xb8] sm:$0xff]
        %v391 = vld [vmem:[%s248 + $0xc0] sm:$0xff]
        %v392 = vld [vmem:[%s248 + $0xc8] sm:$0xff]
        %v393 = vld [vmem:[%s248 + $0xd0] sm:$0xff]
        %v394 = vld [vmem:[%s248 + $0xd8] sm:$0xff]
        %v395 = vld [vmem:[%s248 + $0xe0] sm:$0xff]
        %v396 = vld [vmem:[%s248 + $0xe8] sm:$0xff]
        %v397 = vld [vmem:[%s248 + $0xf0] sm:$0xff]
        %v398 = vld [vmem:[%s248 + $0xf8] sm:$0xff]
        %399 = vmatpush.msra.mxu0 %v397
        %400 = vmatpush.msra.mxu0 %v395
        %401 = vmatpush.msra.mxu0 %v393
        %402 = vmatpush.msra.mxu0 %v391
        %403 = vmatpush.msra.mxu0 %v389
        %404 = vmatpush.msra.mxu0 %v387
        %405 = vmatpush.msra.mxu0 %v385
        %406 = vmatpush.msra.mxu0 %v383
        %407 = vmatpush.msra.mxu0 %v381
        %408 = vmatpush.msra.mxu0 %v379
        %409 = vmatpush.msra.mxu0 %v377
        %410 = vmatpush.msra.mxu0 %v375
        %411 = vmatpush.msra.mxu0 %v373
        %412 = vmatpush.msra.mxu0 %v371
        %413 = vmatpush.msra.mxu0 %v369
        %414 = vmatpush.msra.mxu0 %v367
        %415 = vmatmul.f32.gmra.mxu0 %v351
        %v416 = vpop.f32.mrf.mxu0
        %v417 = vadd.f32 0.0, %v416
        %418 = vmatmul.f32.gmra.mxu0 %v352
        %v419 = vpop.f32.mrf.mxu0
        %v420 = vadd.f32 0.0, %v419
        %421 = vmatmul.f32.gmra.mxu0 %v353
        %v422 = vpop.f32.mrf.mxu0
        %v423 = vadd.f32 0.0, %v422
        %424 = vmatmul.f32.gmra.mxu0 %v354
        %v425 = vpop.f32.mrf.mxu0
        %v426 = vadd.f32 0.0, %v425
        %427 = vmatmul.f32.gmra.mxu0 %v355
        %v428 = vpop.f32.mrf.mxu0
        %v429 = vadd.f32 0.0, %v428
        %430 = vmatmul.f32.gmra.mxu0 %v356
        %v431 = vpop.f32.mrf.mxu0
        %v432 = vadd.f32 0.0, %v431
        %433 = vmatmul.f32.gmra.mxu0 %v357
        %v434 = vpop.f32.mrf.mxu0
        %v435 = vadd.f32 0.0, %v434
        %436 = vmatmul.f32.gmra.mxu0 %v358
        %v437 = vpop.f32.mrf.mxu0
        %v438 = vadd.f32 0.0, %v437
        %439 = vmatmul.f32.gmra.mxu0 %v359
        %v440 = vpop.f32.mrf.mxu0
        %v441 = vadd.f32 0.0, %v440
        %442 = vmatmul.f32.gmra.mxu0 %v360
        %v443 = vpop.f32.mrf.mxu0
        %v444 = vadd.f32 0.0, %v443
        %445 = vmatmul.f32.gmra.mxu0 %v361
        %v446 = vpop.f32.mrf.mxu0
        %v447 = vadd.f32 0.0, %v446
        %448 = vmatmul.f32.gmra.mxu0 %v362
        %v449 = vpop.f32.mrf.mxu0
        %v450 = vadd.f32 0.0, %v449
        %451 = vmatmul.f32.gmra.mxu0 %v363
        %v452 = vpop.f32.mrf.mxu0
        %v453 = vadd.f32 0.0, %v452
        %454 = vmatmul.f32.gmra.mxu0 %v364
        %v455 = vpop.f32.mrf.mxu0
        %v456 = vadd.f32 0.0, %v455
        %457 = vmatmul.f32.gmra.mxu0 %v365
        %v458 = vpop.f32.mrf.mxu0
        %v459 = vadd.f32 0.0, %v458
        %460 = vmatmul.f32.gmra.mxu0 %v366
        %v461 = vpop.f32.mrf.mxu0
        %v462 = vadd.f32 0.0, %v461
        %463 = vdwg.mxu0
        %464 = vmatpush.msra.mxu0 %v398
        %465 = vmatpush.msra.mxu0 %v396
        %466 = vmatpush.msra.mxu0 %v394
        %467 = vmatpush.msra.mxu0 %v392
        %468 = vmatpush.msra.mxu0 %v390
        %469 = vmatpush.msra.mxu0 %v388
        %470 = vmatpush.msra.mxu0 %v386
        %471 = vmatpush.msra.mxu0 %v384
        %472 = vmatpush.msra.mxu0 %v382
        %473 = vmatpush.msra.mxu0 %v380
        %474 = vmatpush.msra.mxu0 %v378
        %475 = vmatpush.msra.mxu0 %v376
        %476 = vmatpush.msra.mxu0 %v374
        %477 = vmatpush.msra.mxu0 %v372
        %478 = vmatpush.msra.mxu0 %v370
        %479 = vmatpush.msra.mxu0 %v368
        %480 = vmatmul.f32.gmra.mxu0 %v351
        %v481 = vpop.f32.mrf.mxu0
        %v482 = vadd.f32 0.0, %v481
        %483 = vmatmul.f32.gmra.mxu0 %v352
        %v484 = vpop.f32.mrf.mxu0
        %v485 = vadd.f32 0.0, %v484
        %486 = vmatmul.f32.gmra.mxu0 %v353
        %v487 = vpop.f32.mrf.mxu0
        %v488 = vadd.f32 0.0, %v487
        %489 = vmatmul.f32.gmra.mxu0 %v354
        %v490 = vpop.f32.mrf.mxu0
        %v491 = vadd.f32 0.0, %v490
        %492 = vmatmul.f32.gmra.mxu0 %v355
        %v493 = vpop.f32.mrf.mxu0
        %v494 = vadd.f32 0.0, %v493
        %495 = vmatmul.f32.gmra.mxu0 %v356
        %v496 = vpop.f32.mrf.mxu0
        %v497 = vadd.f32 0.0, %v496
        %498 = vmatmul.f32.gmra.mxu0 %v357
        %v499 = vpop.f32.mrf.mxu0
        %v500 = vadd.f32 0.0, %v499
        %501 = vmatmul.f32.gmra.mxu0 %v358
        %v502 = vpop.f32.mrf.mxu0
        %v503 = vadd.f32 0.0, %v502
        %504 = vmatmul.f32.gmra.mxu0 %v359
        %v505 = vpop.f32.mrf.mxu0
        %v506 = vadd.f32 0.0, %v505
        %507 = vmatmul.f32.gmra.mxu0 %v360
        %v508 = vpop.f32.mrf.mxu0
        %v509 = vadd.f32 0.0, %v508
        %510 = vmatmul.f32.gmra.mxu0 %v361
        %v511 = vpop.f32.mrf.mxu0
        %v512 = vadd.f32 0.0, %v511
        %513 = vmatmul.f32.gmra.mxu0 %v362
        %v514 = vpop.f32.mrf.mxu0
        %v515 = vadd.f32 0.0, %v514
        %516 = vmatmul.f32.gmra.mxu0 %v363
        %v517 = vpop.f32.mrf.mxu0
        %v518 = vadd.f32 0.0, %v517
        %519 = vmatmul.f32.gmra.mxu0 %v364
        %v520 = vpop.f32.mrf.mxu0
        %v521 = vadd.f32 0.0, %v520
        %522 = vmatmul.f32.gmra.mxu0 %v365
        %v523 = vpop.f32.mrf.mxu0
        %v524 = vadd.f32 0.0, %v523
        %525 = vmatmul.f32.gmra.mxu0 %v366
        %v526 = vpop.f32.mrf.mxu0
        %v527 = vadd.f32 0.0, %v526
        %528 = vdwg.mxu0
        %v529 = vadd.f32 %v319, %v417
        %v530 = vadd.f32 %v320, %v482
        %v531 = vadd.f32 %v321, %v420
        %v532 = vadd.f32 %v322, %v485
        %v533 = vadd.f32 %v323, %v423
        %v534 = vadd.f32 %v324, %v488
        %v535 = vadd.f32 %v325, %v426
        %v536 = vadd.f32 %v326, %v491
        %v537 = vadd.f32 %v327, %v429
        %v538 = vadd.f32 %v328, %v494
        %v539 = vadd.f32 %v329, %v432
        %v540 = vadd.f32 %v330, %v497
        %v541 = vadd.f32 %v331, %v435
        %v542 = vadd.f32 %v332, %v500
        %v543 = vadd.f32 %v333, %v438
        %v544 = vadd.f32 %v334, %v503
        %v545 = vadd.f32 %v335, %v441
        %v546 = vadd.f32 %v336, %v506
        %v547 = vadd.f32 %v337, %v444
        %v548 = vadd.f32 %v338, %v509
        %v549 = vadd.f32 %v339, %v447
        %v550 = vadd.f32 %v340, %v512
        %v551 = vadd.f32 %v341, %v450
        %v552 = vadd.f32 %v342, %v515
        %v553 = vadd.f32 %v343, %v453
        %v554 = vadd.f32 %v344, %v518
        %v555 = vadd.f32 %v345, %v456
        %v556 = vadd.f32 %v346, %v521
        %v557 = vadd.f32 %v347, %v459
        %v558 = vadd.f32 %v348, %v524
        %v559 = vadd.f32 %v349, %v462
        %v560 = vadd.f32 %v350, %v527
        %561 = vst [vmem:[#allocation2] sm:$0xff] %v529
        %562 = vst [vmem:[#allocation2 + $0x8] sm:$0xff] %v530
        %563 = vst [vmem:[#allocation2 + $0x10] sm:$0xff] %v531
        %564 = vst [vmem:[#allocation2 + $0x18] sm:$0xff] %v532
        %565 = vst [vmem:[#allocation2 + $0x20] sm:$0xff] %v533
        %566 = vst [vmem:[#allocation2 + $0x28] sm:$0xff] %v534
        %567 = vst [vmem:[#allocation2 + $0x30] sm:$0xff] %v535
        %568 = vst [vmem:[#allocation2 + $0x38] sm:$0xff] %v536
        %569 = vst [vmem:[#allocation2 + $0x40] sm:$0xff] %v537
        %570 = vst [vmem:[#allocation2 + $0x48] sm:$0xff] %v538
        %571 = vst [vmem:[#allocation2 + $0x50] sm:$0xff] %v539
        %572 = vst [vmem:[#allocation2 + $0x58] sm:$0xff] %v540
        %573 = vst [vmem:[#allocation2 + $0x60] sm:$0xff] %v541
        %574 = vst [vmem:[#allocation2 + $0x68] sm:$0xff] %v542
        %575 = vst [vmem:[#allocation2 + $0x70] sm:$0xff] %v543
        %576 = vst [vmem:[#allocation2 + $0x78] sm:$0xff] %v544
        %577 = vst [vmem:[#allocation2 + $0x80] sm:$0xff] %v545
        %578 = vst [vmem:[#allocation2 + $0x88] sm:$0xff] %v546
        %579 = vst [vmem:[#allocation2 + $0x90] sm:$0xff] %v547
        %580 = vst [vmem:[#allocation2 + $0x98] sm:$0xff] %v548
        %581 = vst [vmem:[#allocation2 + $0xa0] sm:$0xff] %v549
        %582 = vst [vmem:[#allocation2 + $0xa8] sm:$0xff] %v550
        %583 = vst [vmem:[#allocation2 + $0xb0] sm:$0xff] %v551
        %584 = vst [vmem:[#allocation2 + $0xb8] sm:$0xff] %v552
        %585 = vst [vmem:[#allocation2 + $0xc0] sm:$0xff] %v553
        %586 = vst [vmem:[#allocation2 + $0xc8] sm:$0xff] %v554
        %587 = vst [vmem:[#allocation2 + $0xd0] sm:$0xff] %v555
        %588 = vst [vmem:[#allocation2 + $0xd8] sm:$0xff] %v556
        %589 = vst [vmem:[#allocation2 + $0xe0] sm:$0xff] %v557
        %590 = vst [vmem:[#allocation2 + $0xe8] sm:$0xff] %v558
        %591 = vst [vmem:[#allocation2 + $0xf0] sm:$0xff] %v559
        %592 = vst [vmem:[#allocation2 + $0xf8] sm:$0xff] %v560
        %p593 = scmp.eq.s32.totalorder %s28, 3
        // Predicated region
        $region49: #{tpu_custom_call.1} parent=31 // pred_check
          %p594 = pneg %p593
        $region50: #{tpu_custom_call.1} parent=31 // pred_check_branch
          %596 = sbr.rel (%p594) target = $region52
        $region51: #{tpu_custom_call.1} parent=31 // pred_region
          %v597 = vld [vmem:[#allocation2] sm:$0xff]
          %v598 = vld [vmem:[#allocation2 + $0x8] sm:$0xff]
          %v599 = vld [vmem:[#allocation2 + $0x10] sm:$0xff]
          %v600 = vld [vmem:[#allocation2 + $0x18] sm:$0xff]
          %v601 = vld [vmem:[#allocation2 + $0x20] sm:$0xff]
          %v602 = vld [vmem:[#allocation2 + $0x28] sm:$0xff]
          %v603 = vld [vmem:[#allocation2 + $0x30] sm:$0xff]
          %v604 = vld [vmem:[#allocation2 + $0x38] sm:$0xff]
          %v605 = vld [vmem:[#allocation2 + $0x40] sm:$0xff]
          %v606 = vld [vmem:[#allocation2 + $0x48] sm:$0xff]
          %v607 = vld [vmem:[#allocation2 + $0x50] sm:$0xff]
          %v608 = vld [vmem:[#allocation2 + $0x58] sm:$0xff]
          %v609 = vld [vmem:[#allocation2 + $0x60] sm:$0xff]
          %v610 = vld [vmem:[#allocation2 + $0x68] sm:$0xff]
          %v611 = vld [vmem:[#allocation2 + $0x70] sm:$0xff]
          %v612 = vld [vmem:[#allocation2 + $0x78] sm:$0xff]
          %v613 = vld [vmem:[#allocation2 + $0x80] sm:$0xff]
          %v614 = vld [vmem:[#allocation2 + $0x88] sm:$0xff]
          %v615 = vld [vmem:[#allocation2 + $0x90] sm:$0xff]
          %v616 = vld [vmem:[#allocation2 + $0x98] sm:$0xff]
          %v617 = vld [vmem:[#allocation2 + $0xa0] sm:$0xff]
          %v618 = vld [vmem:[#allocation2 + $0xa8] sm:$0xff]
          %v619 = vld [vmem:[#allocation2 + $0xb0] sm:$0xff]
          %v620 = vld [vmem:[#allocation2 + $0xb8] sm:$0xff]
          %v621 = vld [vmem:[#allocation2 + $0xc0] sm:$0xff]
          %v622 = vld [vmem:[#allocation2 + $0xc8] sm:$0xff]
          %v623 = vld [vmem:[#allocation2 + $0xd0] sm:$0xff]
          %v624 = vld [vmem:[#allocation2 + $0xd8] sm:$0xff]
          %v625 = vld [vmem:[#allocation2 + $0xe0] sm:$0xff]
          %v626 = vld [vmem:[#allocation2 + $0xe8] sm:$0xff]
          %v627 = vld [vmem:[#allocation2 + $0xf0] sm:$0xff]
          %v628 = vld [vmem:[#allocation2 + $0xf8] sm:$0xff]
          %v629 = vld [vmem:[#allocation8] sm:$0x3]
          %v631 = vperm.slane %v629, 0
          %v632 = vperm.slane %v629, 1
          %v635 = vadd.f32 %v597, %v631
          %v636 = vadd.f32 %v598, %v632
          %v637 = vadd.f32 %v599, %v631
          %v638 = vadd.f32 %v600, %v632
          %v639 = vadd.f32 %v601, %v631
          %v640 = vadd.f32 %v602, %v632
          %v641 = vadd.f32 %v603, %v631
          %v642 = vadd.f32 %v604, %v632
          %v643 = vadd.f32 %v605, %v631
          %v644 = vadd.f32 %v606, %v632
          %v645 = vadd.f32 %v607, %v631
          %v646 = vadd.f32 %v608, %v632
          %v647 = vadd.f32 %v609, %v631
          %v648 = vadd.f32 %v610, %v632
          %v649 = vadd.f32 %v611, %v631
          %v650 = vadd.f32 %v612, %v632
          %v651 = vadd.f32 %v613, %v631
          %v652 = vadd.f32 %v614, %v632
          %v653 = vadd.f32 %v615, %v631
          %v654 = vadd.f32 %v616, %v632
          %v655 = vadd.f32 %v617, %v631
          %v656 = vadd.f32 %v618, %v632
          %v657 = vadd.f32 %v619, %v631
          %v658 = vadd.f32 %v620, %v632
          %v659 = vadd.f32 %v621, %v631
          %v660 = vadd.f32 %v622, %v632
          %v661 = vadd.f32 %v623, %v631
          %v662 = vadd.f32 %v624, %v632
          %v663 = vadd.f32 %v625, %v631
          %v664 = vadd.f32 %v626, %v632
          %v665 = vadd.f32 %v627, %v631
          %v666 = vadd.f32 %v628, %v632
          %667 = vst [vmem:[#allocation9] sm:$0xff] %v635
          %668 = vst [vmem:[#allocation9 + $0x8] sm:$0xff] %v636
          %669 = vst [vmem:[#allocation9 + $0x10] sm:$0xff] %v637
          %670 = vst [vmem:[#allocation9 + $0x18] sm:$0xff] %v638
          %671 = vst [vmem:[#allocation9 + $0x20] sm:$0xff] %v639
          %672 = vst [vmem:[#allocation9 + $0x28] sm:$0xff] %v640
          %673 = vst [vmem:[#allocation9 + $0x30] sm:$0xff] %v641
          %674 = vst [vmem:[#allocation9 + $0x38] sm:$0xff] %v642
          %675 = vst [vmem:[#allocation9 + $0x40] sm:$0xff] %v643
          %676 = vst [vmem:[#allocation9 + $0x48] sm:$0xff] %v644
          %677 = vst [vmem:[#allocation9 + $0x50] sm:$0xff] %v645
          %678 = vst [vmem:[#allocation9 + $0x58] sm:$0xff] %v646
          %679 = vst [vmem:[#allocation9 + $0x60] sm:$0xff] %v647
          %680 = vst [vmem:[#allocation9 + $0x68] sm:$0xff] %v648
          %681 = vst [vmem:[#allocation9 + $0x70] sm:$0xff] %v649
          %682 = vst [vmem:[#allocation9 + $0x78] sm:$0xff] %v650
          %683 = vst [vmem:[#allocation9 + $0x80] sm:$0xff] %v651
          %684 = vst [vmem:[#allocation9 + $0x88] sm:$0xff] %v652
          %685 = vst [vmem:[#allocation9 + $0x90] sm:$0xff] %v653
          %686 = vst [vmem:[#allocation9 + $0x98] sm:$0xff] %v654
          %687 = vst [vmem:[#allocation9 + $0xa0] sm:$0xff] %v655
          %688 = vst [vmem:[#allocation9 + $0xa8] sm:$0xff] %v656
          %689 = vst [vmem:[#allocation9 + $0xb0] sm:$0xff] %v657
          %690 = vst [vmem:[#allocation9 + $0xb8] sm:$0xff] %v658
          %691 = vst [vmem:[#allocation9 + $0xc0] sm:$0xff] %v659
          %692 = vst [vmem:[#allocation9 + $0xc8] sm:$0xff] %v660
          %693 = vst [vmem:[#allocation9 + $0xd0] sm:$0xff] %v661
          %694 = vst [vmem:[#allocation9 + $0xd8] sm:$0xff] %v662
          %695 = vst [vmem:[#allocation9 + $0xe0] sm:$0xff] %v663
          %696 = vst [vmem:[#allocation9 + $0xe8] sm:$0xff] %v664
          %697 = vst [vmem:[#allocation9 + $0xf0] sm:$0xff] %v665
          %698 = vst [vmem:[#allocation9 + $0xf8] sm:$0xff] %v666
        $region52: #{tpu_custom_call.1} parent=31 // pred_fallthru
          _
        // Predicated region
        $region53: #{tpu_custom_call.1} parent=31 // pred_check
          %p699 = pneg %p142
        $region54: #{tpu_custom_call.1} parent=31 // pred_check_branch
          %701 = sbr.rel (%p699) target = $region56
        $region55: #{tpu_custom_call.1} parent=31 // pred_region
          %s702 = smul.u32 16, %s26
          %s703 = smul.u32 2, %s27
          %705 = vsyncadd [#allocation5], 0
          %s706 = smul.addr %s702, 2
          %s707 = sadd.s32 %s703, %s706
          %s708 = smul.addr %s707, 8
          %s709 = scalar_lea.hbm %s3, %s708
          %s710 = sshll.u32 [#allocation9], 4
          %s711 = int_to_ptr.vmem [resolvable:$true] %s710
          %s712 = sshll.u32 %s709, 4
          %s713 = int_to_ptr.hbm [resolvable:$true] %s712
          %718 = dma.vmem_to_hbm [thread:$0]  %s711, 4096, %s713, [#allocation5], 256, 256, 16
        $region56: #{tpu_custom_call.1} parent=31 // pred_fallthru
          _
        // Predicated region
        $region57: #{tpu_custom_call.1} parent=31 // pred_check
          %p719 = pneg %p142
        $region58: #{tpu_custom_call.1} parent=31 // pred_check_branch
          %721 = sbr.rel (%p719) target = $region60
        $region59: #{tpu_custom_call.1} parent=31 // pred_region
          %723 = dma.done [#allocation5], 4096
        $region60: #{tpu_custom_call.1} parent=31 // pred_fallthru
          _
      $region32: #{tpu_custom_call.1} parent=5 // pred_fallthru
        _
      %p724 = scmp.le.s32.totalorder 2, %s16
      // Predicated region
      $region61: #{tpu_custom_call.1} parent=5 // pred_check
        %p725 = pneg %p724
      $region62: #{tpu_custom_call.1} parent=5 // pred_check_branch
        %727 = sbr.rel (%p725) target = $region64
      $region63: #{tpu_custom_call.1} parent=5 // pred_region
        %s728 = ssub.s32 %s16, 2
      $region64: #{tpu_custom_call.1} parent=5 // pred_fallthru
        _
    $region6: #{tpu_custom_call.1} parent=1 // loop_footer
      %s20 = sadd.s32 1, %s16
    $region7: #{tpu_custom_call.1} parent=1 // loop_footer_branch
      %15 = sbr.rel target = $region3
    $region8: #{tpu_custom_call.1} parent=1 // loop_exit
      _
    %729 = vsyncpa [#allocation4], 1
    %s730 = scalar_lea.sflag [#allocation4], 1
    %731 = vsyncpa %s730, 1
    %732 = vsyncpa [#allocation7], 1
    %s733 = scalar_lea.sflag [#allocation7], 1
    %734 = vsyncpa %s733, 1
    %735 = vsyncpa [#allocation5], 1
    %s736 = scalar_lea.sflag [#allocation5], 1
    %737 = vsyncpa %s736, 1

</llo_original>
